<compile_context>
chip_gen: v7x
topology: tpu7x:2x2x1
jax: 0.10.0
libtpu: 0.0.40
codegen_flags: <defaults>
</compile_context>

<pallas_src>
import functools

import jax
import jax.numpy as jnp
from jax.experimental import pallas as pl
from jax.experimental.pallas import tpu as pltpu


def _round_up(n, m):
    return ((n + m - 1) // m) * m


def _cdiv(a, b):
    return -(-a // b)


def _pad_feature_dim(f):
    # v6e/v7x MXUs are 256 wide; use 256-lane padding once F is large enough
    # that the extra zero lanes are negligible, else 128.
    return _round_up(f, 256) if f > 512 else _round_up(f, 128)


def _pick_tile_b(batch, max_tile_b=512):
    """Batch tile: multiple of 16 (native bf16 sublane tile), <= max_tile_b,
    and for large batches chosen so the grid has ~8+ steps (pipelining /
    megacore) without wasting much batch padding."""
    target = _round_up(batch, 16)
    if target <= max_tile_b:
        return target                              # whole batch in one step
    cap = min(max_tile_b, max(16, _round_up(_cdiv(target, 8), 16)))
    best_tb, best_cost = 16, None
    for tb in range(16, cap + 1, 16):
        padded = _round_up(batch, tb)
        # cost proxy: wasted padded rows + per-step overhead
        cost = (padded - batch) + 16 * (padded // tb)
        if best_cost is None or cost <= best_cost:
            best_tb, best_cost = tb, cost
    return best_tb


def _vmem_limit_bytes():
    # ~75% of physical VMEM: ~48 MiB on v7x (64 MiB/TC), ~96 MiB on v5e/v6e.
    try:
        cap = int(pltpu.get_tpu_info().vmem_capacity_bytes)
    except Exception:
        cap = 64 << 20
    return min(cap * 3 // 4, 100 << 20)


def _resident_spec(shape):
    """VMEM-resident operand (constant index_map). Single-buffered when the
    running JAX supports pipeline_mode (double-buffering a constant block
    only doubles its VMEM footprint)."""
    index_map = lambda *_: (0,) * len(shape)
    try:
        return pl.BlockSpec(shape, index_map, pipeline_mode=pl.Buffered(1))
    except Exception:
        return pl.BlockSpec(shape, index_map)


# ---------------------------------------------------------------------------
# Kernels
# ---------------------------------------------------------------------------

def _classifier_kernel(x_ref, w1_ref, b1_ref, w2_ref, b2_ref, o_ref):
    # Linear1 (BN folded) -> ReLU -> Linear2.  Dropout(0.5) identity in eval.
    x = x_ref[...].astype(w1_ref.dtype)
    h = jnp.dot(x, w1_ref[...], preferred_element_type=jnp.float32) + b1_ref[...]
    h = jnp.maximum(h, 0.0)
    o_ref[...] = (jnp.dot(h.astype(w2_ref.dtype), w2_ref[...],
                          preferred_element_type=jnp.float32)
                  + b2_ref[...]).astype(o_ref.dtype)


def _classifier_kernel_ftiled(x_ref, w1_ref, b1_ref, w2_ref, b2_ref, o_ref,
                              acc_ref):
    # Hidden dim tiled along grid axis 1 ("arbitrary"); the second matmul is
    # accumulated into a (tb, Cp) f32 VMEM scratch.
    j = pl.program_id(1)

    @pl.when(j == 0)
    def _():
        acc_ref[...] = jnp.zeros_like(acc_ref)

    x = x_ref[...].astype(w1_ref.dtype)
    h = jnp.dot(x, w1_ref[...], preferred_element_type=jnp.float32) + b1_ref[...]
    h = jnp.maximum(h, 0.0)
    acc_ref[...] += jnp.dot(h.astype(w2_ref.dtype), w2_ref[...],
                            preferred_element_type=jnp.float32)

    @pl.when(j == pl.num_programs(1) - 1)
    def _():
        o_ref[...] = (acc_ref[...] + b2_ref[...]).astype(o_ref.dtype)


# ---------------------------------------------------------------------------
# Wrappers
# ---------------------------------------------------------------------------

def prepare_classifier_params(w1_t, b1, w2_t, b2):
    """One-time weight prep (pad to lane-dense shapes + bf16 cast), hoisted out
    of the per-call path so each forward does not re-stream the weights."""
    F = w1_t.shape[0]
    C = w2_t.shape[1]
    Fp = _pad_feature_dim(F)
    Cp = _round_up(C, 128)
    w1p = jnp.zeros((Fp, Fp), jnp.bfloat16).at[:F, :F].set(w1_t.astype(jnp.bfloat16))
    b1p = jnp.zeros((1, Fp), jnp.float32).at[:, :F].set(jnp.reshape(b1, (1, F)))
    w2p = jnp.zeros((Fp, Cp), jnp.bfloat16).at[:F, :C].set(w2_t.astype(jnp.bfloat16))
    b2p = jnp.zeros((1, Cp), jnp.float32).at[:, :C].set(jnp.reshape(b2, (1, C)))
    return dict(w1=w1p, b1=b1p, w2=w2p, b2=b2p)


@functools.partial(jax.jit, static_argnames=("num_classes", "max_tile_b", "tile_f"))
def classifier_forward(x, w1p, b1p, w2p, b2p, *, num_classes=10,
                       max_tile_b=512, tile_f=None):
    """x: (B, F) f32/bf16. w1p/b1p/w2p/b2p: prepare_classifier_params outputs.
    Returns (B, num_classes) f32 logits (eval-mode forward)."""
    B, F = x.shape
    Fp = w1p.shape[0]
    Cp = w2p.shape[1]
    assert b1p.shape == (1, Fp) and b2p.shape == (1, Cp)
    assert F <= Fp and num_classes <= Cp

    tb = _pick_tile_b(B, max_tile_b)
    Bp = _round_up(B, tb)
    grid_b = Bp // tb
    vmem_limit = _vmem_limit_bytes()

    if B == Bp and F == Fp:
        xp = x  # no extra HBM pass; cast to bf16 inside the kernel
    else:
        xp = jnp.zeros((Bp, Fp), jnp.bfloat16).at[:B, :F].set(
            x.astype(jnp.bfloat16))

    # Resident-weight path for small/medium F; hidden-dim-tiled path when W1
    # would eat too much VMEM (or when explicitly requested via tile_f).
    use_ftiled = (tile_f is not None) or (Fp * Fp * 2 > (16 << 20))

    if not use_ftiled:
        out = pl.pallas_call(
            _classifier_kernel,
            out_shape=jax.ShapeDtypeStruct((Bp, Cp), jnp.float32),
            grid=(grid_b,),
            in_specs=[
                pl.BlockSpec((tb, Fp), lambda i: (i, 0)),   # x tile (pipelined)
                _resident_spec((Fp, Fp)),                   # W1' (single-buffered)
                _resident_spec((1, Fp)),                    # b1'
                _resident_spec((Fp, Cp)),                   # W2
                _resident_spec((1, Cp)),                    # b2
            ],
            out_specs=pl.BlockSpec((tb, Cp), lambda i: (i, 0)),
            compiler_params=pltpu.CompilerParams(
                dimension_semantics=("parallel",),
                vmem_limit_bytes=vmem_limit),
        )(xp, w1p, b1p, w2p, b2p)
    else:
        if tile_f is None:
            tile_f = next(t for t in (512, 256, 128) if Fp % t == 0)
        assert Fp % tile_f == 0
        grid_f = Fp // tile_f
        out = pl.pallas_call(
            _classifier_kernel_ftiled,
            out_shape=jax.ShapeDtypeStruct((Bp, Cp), jnp.float32),
            grid=(grid_b, grid_f),
            in_specs=[
                pl.BlockSpec((tb, Fp), lambda i, j: (i, 0)),      # x (per-i resident)
                pl.BlockSpec((Fp, tile_f), lambda i, j: (0, j)),  # W1' column block
                pl.BlockSpec((1, tile_f), lambda i, j: (0, j)),   # b1' block
                pl.BlockSpec((tile_f, Cp), lambda i, j: (j, 0)),  # W2 row block
                _resident_spec((1, Cp)),                          # b2
            ],
            out_specs=pl.BlockSpec((tb, Cp), lambda i, j: (i, 0)),
            scratch_shapes=[pltpu.VMEM((tb, Cp), jnp.float32)],
            compiler_params=pltpu.CompilerParams(
                dimension_semantics=("parallel", "arbitrary"),
                vmem_limit_bytes=vmem_limit),
        )(xp, w1p, b1p, w2p, b2p)

    return out[:B, :num_classes]


def init_classifier_params(key, feature_dim, num_classes=10):
    """Mirrors Classifier.init_weights(); eval-mode BatchNorm folded into W1/b1."""
    k1, k2, k3, k4, k5 = jax.random.split(key, 5)
    # Linear weights ~ N(0, 0.1); PyTorch stores (out, in) -> transpose to (in, out).
    w1 = 0.1 * jax.random.normal(k1, (feature_dim, feature_dim), jnp.float32)
    w2 = 0.1 * jax.random.normal(k2, (num_classes, feature_dim), jnp.float32)
    # Linear biases keep PyTorch default: U(-1/sqrt(fan_in), 1/sqrt(fan_in)).
    bound = 1.0 / jnp.sqrt(feature_dim)
    b1 = jax.random.uniform(k3, (1, feature_dim), jnp.float32, -bound, bound)
    b2 = jax.random.uniform(k4, (1, num_classes), jnp.float32, -bound, bound)
    # BatchNorm1d: gamma ~ N(1, 0.02), beta = 0, running_mean = 0, running_var = 1.
    gamma = 1.0 + 0.02 * jax.random.normal(k5, (feature_dim,), jnp.float32)
    beta = jnp.zeros((feature_dim,), jnp.float32)
    running_mean = jnp.zeros((feature_dim,), jnp.float32)
    running_var = jnp.ones((feature_dim,), jnp.float32)
    eps = 1e-5
    inv_std = 1.0 / jnp.sqrt(running_var + eps)
    bn_scale = (gamma * inv_std).reshape(1, feature_dim)
    bn_shift = (beta - gamma * running_mean * inv_std).reshape(1, feature_dim)
    # Fold BN (eval) into the first Linear.
    w1_t_folded = w1.T * bn_scale
    b1_folded = b1 * bn_scale + bn_shift
    # TODO(synk): training-mode BatchNorm (batch statistics) and Dropout(0.5)
    # masking (pltpu.prng_random_bits) are not emitted; this is eval-mode only.
    return dict(w1_t=w1_t_folded, b1=b1_folded, w2_t=w2.T, b2=b2)


if __name__ == "__main__":
    key = jax.random.PRNGKey(0)
    k_x1, k_p1, k_x2, k_p2 = jax.random.split(key, 4)

    # ---- Case 1: small feature_dim -> resident-weight path ----
    batch, feature_dim = 8, 32
    x = jax.random.normal(k_x1, (batch, feature_dim), jnp.float32)
    raw = init_classifier_params(k_p1, feature_dim)
    packed = prepare_classifier_params(raw["w1_t"], raw["b1"], raw["w2_t"], raw["b2"])
    out = classifier_forward(x, packed["w1"], packed["b1"], packed["w2"], packed["b2"])
    out = jax.block_until_ready(out)
    assert out.shape == (batch, 10)
    assert out.dtype == jnp.float32

    # Matched-precision reference (bf16 MXU inputs, f32 accumulation).
    xb = x.astype(jnp.bfloat16)
    w1b = raw["w1_t"].astype(jnp.bfloat16)
    w2b = raw["w2_t"].astype(jnp.bfloat16)
    h = jnp.maximum(jnp.dot(xb, w1b, preferred_element_type=jnp.float32) + raw["b1"], 0.0)
    ref = jnp.dot(h.astype(jnp.bfloat16), w2b,
                  preferred_element_type=jnp.float32) + raw["b2"]
    assert jnp.allclose(out, ref, atol=2e-3, rtol=2e-3)

    # Full-f32 reference (looser tolerance for bf16 weights/activations).
    ref32 = jnp.maximum(x @ raw["w1_t"] + raw["b1"], 0.0) @ raw["w2_t"] + raw["b2"]
    assert jnp.allclose(out, ref32, atol=5e-2, rtol=5e-2)

    # ---- Case 2: hidden-dim-tiled path (forced via tile_f, 2 reduction steps) ----
    batch2, feature_dim2 = 24, 256
    x2 = jax.random.normal(k_x2, (batch2, feature_dim2), jnp.float32)
    raw2 = init_classifier_params(k_p2, feature_dim2)
    packed2 = prepare_classifier_params(raw2["w1_t"], raw2["b1"], raw2["w2_t"], raw2["b2"])
    out2 = classifier_forward(x2, packed2["w1"], packed2["b1"], packed2["w2"],
                              packed2["b2"], tile_f=128)
    out2 = jax.block_until_ready(out2)
    assert out2.shape == (batch2, 10)
    xb2 = x2.astype(jnp.bfloat16)
    h2 = jnp.maximum(jnp.dot(xb2, raw2["w1_t"].astype(jnp.bfloat16),
                             preferred_element_type=jnp.float32) + raw2["b1"], 0.0)
    ref2 = jnp.dot(h2.astype(jnp.bfloat16), raw2["w2_t"].astype(jnp.bfloat16),
                   preferred_element_type=jnp.float32) + raw2["b2"]
    assert jnp.allclose(out2, ref2, atol=5e-3, rtol=5e-3)

    print("KERNEL_OK")
</pallas_src>

<mosaic_0001>
module attributes {stable_mosaic.version = 11 : i64} {
  func.func @_classifier_kernel(%arg0: i32, %arg1: memref<16x128xbf16, #tpu.memory_space<vmem>>, %arg2: memref<128x128xbf16, #tpu.memory_space<vmem>>, %arg3: memref<1x128xf32, #tpu.memory_space<vmem>>, %arg4: memref<128x128xbf16, #tpu.memory_space<vmem>>, %arg5: memref<1x128xf32, #tpu.memory_space<vmem>>, %arg6: memref<16x128xf32, #tpu.memory_space<vmem>>) attributes {dimension_semantics = [#tpu.dimension_semantics<parallel>], iteration_bounds = array<i64: 1>, scalar_prefetch = 0 : i64, scratch_operands = 0 : i64, tpu.core_type = #tpu.core_type<tc>, window_params = [{transform_indices = @transform_0, window_bounds = array<i64: 16, 128>}, {pipeline_mode = #tpu.pipeline_mode<synchronous>, transform_indices = @transform_1, window_bounds = array<i64: 128, 128>}, {pipeline_mode = #tpu.pipeline_mode<synchronous>, transform_indices = @transform_2, window_bounds = array<i64: 1, 128>}, {pipeline_mode = #tpu.pipeline_mode<synchronous>, transform_indices = @transform_3, window_bounds = array<i64: 128, 128>}, {pipeline_mode = #tpu.pipeline_mode<synchronous>, transform_indices = @transform_4, window_bounds = array<i64: 1, 128>}, {transform_indices = @transform_5, window_bounds = array<i64: 16, 128>}]} {
    %c0 = arith.constant 0 : index
    %c0_0 = arith.constant 0 : index
    %0 = vector.load %arg1[%c0, %c0_0] : memref<16x128xbf16, #tpu.memory_space<vmem>>, vector<16x128xbf16>
    %c0_1 = arith.constant 0 : index
    %c0_2 = arith.constant 0 : index
    %1 = vector.load %arg2[%c0_1, %c0_2] : memref<128x128xbf16, #tpu.memory_space<vmem>>, vector<128x128xbf16>
    %cst = arith.constant dense<0.000000e+00> : vector<16x128xf32>
    %2 = tpu.matmul %0, %1, %cst {dimension_numbers = #tpu.dot_dimension_numbers<[1], [0], [0], [1], [0, 0, 1, 1], [], []>} : vector<16x128xbf16>, vector<128x128xbf16>, vector<16x128xf32> -> vector<16x128xf32>
    %c0_3 = arith.constant 0 : index
    %c0_4 = arith.constant 0 : index
    %3 = vector.load %arg3[%c0_3, %c0_4] : memref<1x128xf32, #tpu.memory_space<vmem>>, vector<1x128xf32>
    %4 = vector.broadcast %3 : vector<1x128xf32> to vector<16x128xf32>
    %5 = arith.addf %2, %4 : vector<16x128xf32>
    %cst_5 = arith.constant 0.000000e+00 : f32
    %6 = vector.broadcast %cst_5 : f32 to vector<16x128xf32>
    %7 = arith.maximumf %5, %6 : vector<16x128xf32>
    %8 = arith.truncf %7 : vector<16x128xf32> to vector<16x128xbf16>
    %c0_6 = arith.constant 0 : index
    %c0_7 = arith.constant 0 : index
    %9 = vector.load %arg4[%c0_6, %c0_7] : memref<128x128xbf16, #tpu.memory_space<vmem>>, vector<128x128xbf16>
    %cst_8 = arith.constant dense<0.000000e+00> : vector<16x128xf32>
    %10 = tpu.matmul %8, %9, %cst_8 {dimension_numbers = #tpu.dot_dimension_numbers<[1], [0], [0], [1], [0, 0, 1, 1], [], []>} : vector<16x128xbf16>, vector<128x128xbf16>, vector<16x128xf32> -> vector<16x128xf32>
    %c0_9 = arith.constant 0 : index
    %c0_10 = arith.constant 0 : index
    %11 = vector.load %arg5[%c0_9, %c0_10] : memref<1x128xf32, #tpu.memory_space<vmem>>, vector<1x128xf32>
    %12 = vector.broadcast %11 : vector<1x128xf32> to vector<16x128xf32>
    %13 = arith.addf %10, %12 : vector<16x128xf32>
    %c0_11 = arith.constant 0 : index
    %c0_12 = arith.constant 0 : index
    %14 = vector.load %arg6[%c0_11, %c0_12] : memref<16x128xf32, #tpu.memory_space<vmem>>, vector<16x128xf32>
    tpu.vector_store %arg6[%c0_11, %c0_12], %13 {strides = array<i32>} : memref<16x128xf32, #tpu.memory_space<vmem>>, vector<16x128xf32>,
    return
  }
  func.func @transform_0(%arg0: i32) -> (i32, i32) {
    %c0_i32 = arith.constant 0 : i32
    %c0_i32_0 = arith.constant 0 : i32
    return %arg0, %c0_i32 : i32, i32
  }
  func.func @transform_1(%arg0: i32) -> (i32, i32) {
    %c0_i32 = arith.constant 0 : i32
    %c0_i32_0 = arith.constant 0 : i32
    %c0_i32_1 = arith.constant 0 : i32
    return %c0_i32, %c0_i32_0 : i32, i32
  }
  func.func @transform_2(%arg0: i32) -> (i32, i32) {
    %c0_i32 = arith.constant 0 : i32
    %c0_i32_0 = arith.constant 0 : i32
    %c0_i32_1 = arith.constant 0 : i32
    return %c0_i32, %c0_i32_0 : i32, i32
  }
  func.func @transform_3(%arg0: i32) -> (i32, i32) {
    %c0_i32 = arith.constant 0 : i32
    %c0_i32_0 = arith.constant 0 : i32
    %c0_i32_1 = arith.constant 0 : i32
    return %c0_i32, %c0_i32_0 : i32, i32
  }
  func.func @transform_4(%arg0: i32) -> (i32, i32) {
    %c0_i32 = arith.constant 0 : i32
    %c0_i32_0 = arith.constant 0 : i32
    %c0_i32_1 = arith.constant 0 : i32
    return %c0_i32, %c0_i32_0 : i32, i32
  }
  func.func @transform_5(%arg0: i32) -> (i32, i32) {
    %c0_i32 = arith.constant 0 : i32
    %c0_i32_0 = arith.constant 0 : i32
    return %arg0, %c0_i32 : i32, i32
  }
}

</mosaic_0001>

<llo_original>
// kernel: classifier_forward.1
$region0: #{classifier_forward.1}
  #allocation0 [shape = 'u32[]', space=smem, size = 0x4, offset = 0x4, fixed_abs, tag = 'smem constant byte address 0x4 - core index']
  #allocation1 [shape = 'u32[144,128]{1,0:T(1,128)}', space=vmem, size = 0x12000, scoped, tag = 'internal scratch']
  %s0 = inlined_call_operand.vmem [shape: bf16[16,128], index: 0, kind: input, shape index: {}]
  %s1 = inlined_call_operand.hbm [shape: bf16[128,128], index: 1, kind: input, shape index: {}]
  %s2 = inlined_call_operand.vmem [shape: f32[1,128], index: 2, kind: input, shape index: {}]
  %s3 = inlined_call_operand.hbm [shape: bf16[128,128], index: 3, kind: input, shape index: {}]
  %s4 = inlined_call_operand.vmem [shape: f32[1,128], index: 4, kind: input, shape index: {}]
  %s5 = inlined_call_operand.vmem [shape: f32[16,128], index: 5, kind: output, shape index: {}]
  %s6 = sld [smem:[#allocation0]]
  $region38: #{classifier_forward.1} parent=0
    _
  %s8 = ssub.s32 1, %s6
  %s9 = scalar_select 0, %s8, %s6
  $region1: #{classifier_forward.1} parent=0
    #allocation2 [shape = 'u8[32768]{0}', space=vmem, size = 0x8000, scoped, tag = 'input window, operand 1, single buffered']
    #allocation3 [shape = 's32[1]{0}', space=sflag, size = 0x4, scoped, tag = 'scoped memory for classifier_forward.1']
    #allocation4 [shape = 'u8[32768]{0}', space=vmem, size = 0x8000, scoped, tag = 'input window, operand 3, single buffered']
    #allocation5 [shape = 's32[1]{0}', space=sflag, size = 0x4, scoped, tag = 'scoped memory for classifier_forward.1']
    %10 = vsyncpa [#allocation3], 0
    %11 = vsyncpa [#allocation5], 0
    // Predicated region
    $region2: #{classifier_forward.1} parent=1 // pred_check
      _
    $region3: #{classifier_forward.1} parent=1 // pred_check_branch
      %13 = sbr.rel (0) target = $region5
    $region4: #{classifier_forward.1} parent=1 // pred_region
      _
    $region5: #{classifier_forward.1} parent=1 // pred_fallthru
      _
    // Predicated region
    $region6: #{classifier_forward.1} parent=1 // pred_check
      _
    $region7: #{classifier_forward.1} parent=1 // pred_check_branch
      %15 = sbr.rel (0) target = $region9
    $region8: #{classifier_forward.1} parent=1 // pred_region
      %s17 = ssub.s32 1024, 1024
      %18 = vsyncadd [#allocation3], %s17
      %s19 = sshll.u32 [#allocation2], 4
      %s20 = int_to_ptr.vmem [resolvable:$true] %s19
      %25 = dma.hbm_to_vmem [thread:$0]  %s1, 1024, %s20, [#allocation3], 64, 64, 4
    $region9: #{classifier_forward.1} parent=1 // pred_fallthru
      _
    // Predicated region
    $region10: #{classifier_forward.1} parent=1 // pred_check
      _
    $region11: #{classifier_forward.1} parent=1 // pred_check_branch
      %27 = sbr.rel (0) target = $region13
    $region12: #{classifier_forward.1} parent=1 // pred_region
      _
    $region13: #{classifier_forward.1} parent=1 // pred_fallthru
      _
    // Predicated region
    $region14: #{classifier_forward.1} parent=1 // pred_check
      _
    $region15: #{classifier_forward.1} parent=1 // pred_check_branch
      %29 = sbr.rel (0) target = $region17
    $region16: #{classifier_forward.1} parent=1 // pred_region
      %s31 = ssub.s32 1024, 1024
      %32 = vsyncadd [#allocation5], %s31
      %s33 = sshll.u32 [#allocation4], 4
      %s34 = int_to_ptr.vmem [resolvable:$true] %s33
      %39 = dma.hbm_to_vmem [thread:$0]  %s3, 1024, %s34, [#allocation5], 64, 64, 4
    $region17: #{classifier_forward.1} parent=1 // pred_fallthru
      _
    // Predicated region
    $region18: #{classifier_forward.1} parent=1 // pred_check
      _
    $region19: #{classifier_forward.1} parent=1 // pred_check_branch
      %41 = sbr.rel (0) target = $region21
    $region20: #{classifier_forward.1} parent=1 // pred_region
      _
    $region21: #{classifier_forward.1} parent=1 // pred_fallthru
      _
    // Predicated region
    $region22: #{classifier_forward.1} parent=1 // pred_check
      _
    $region23: #{classifier_forward.1} parent=1 // pred_check_branch
      %43 = sbr.rel (0) target = $region25
    $region24: #{classifier_forward.1} parent=1 // pred_region
      %44 = dma.done [#allocation3], 1024
    $region25: #{classifier_forward.1} parent=1 // pred_fallthru
      _
    // Predicated region
    $region26: #{classifier_forward.1} parent=1 // pred_check
      _
    $region27: #{classifier_forward.1} parent=1 // pred_check_branch
      %46 = sbr.rel (0) target = $region29
    $region28: #{classifier_forward.1} parent=1 // pred_region
      %47 = dma.done [#allocation5], 1024
    $region29: #{classifier_forward.1} parent=1 // pred_fallthru
      _
    %v49 = vld [vmem:[%s0] sm:$0xf]
    %v50 = vld [vmem:[%s0 + $0x4] sm:$0xf]
    %v51 = vld [vmem:[#allocation2] sm:$0xf]
    %v52 = vld [vmem:[#allocation2 + $0x4] sm:$0xf]
    %v53 = vld [vmem:[#allocation2 + $0x8] sm:$0xf]
    %v54 = vld [vmem:[#allocation2 + $0xc] sm:$0xf]
    %v55 = vld [vmem:[#allocation2 + $0x10] sm:$0xf]
    %v56 = vld [vmem:[#allocation2 + $0x14] sm:$0xf]
    %v57 = vld [vmem:[#allocation2 + $0x18] sm:$0xf]
    %v58 = vld [vmem:[#allocation2 + $0x1c] sm:$0xf]
    %v59 = vld [vmem:[#allocation2 + $0x20] sm:$0xf]
    %v60 = vld [vmem:[#allocation2 + $0x24] sm:$0xf]
    %v61 = vld [vmem:[#allocation2 + $0x28] sm:$0xf]
    %v62 = vld [vmem:[#allocation2 + $0x2c] sm:$0xf]
    %v63 = vld [vmem:[#allocation2 + $0x30] sm:$0xf]
    %v64 = vld [vmem:[#allocation2 + $0x34] sm:$0xf]
    %v65 = vld [vmem:[#allocation2 + $0x38] sm:$0xf]
    %v66 = vld [vmem:[#allocation2 + $0x3c] sm:$0xf]
    %v67 = vld [vmem:[%s2] sm:$0x1]
    %v69 = vlaneseq
    %v70 = vshrl.u32 %v69, 7
    %v71 = vsub.s32 0, %v70
    %v72 = vrot.slane %v67, %v71
    %v76 = vunpack.c.l.b16 %v49
    %v77 = vunpack.c.l.b16 %v50
    %v78 = vpack.c.b16 %v77, %v76
    %v96 = vunpack.c.l.b16 %v51
    %v97 = vunpack.c.l.b16 %v52
    %v98 = vunpack.c.l.b16 %v53
    %v99 = vunpack.c.l.b16 %v54
    %v100 = vunpack.c.l.b16 %v55
    %v101 = vunpack.c.l.b16 %v56
    %v102 = vunpack.c.l.b16 %v57
    %v103 = vunpack.c.l.b16 %v58
    %v104 = vunpack.c.l.b16 %v59
    %v105 = vunpack.c.l.b16 %v60
    %v106 = vunpack.c.l.b16 %v61
    %v107 = vunpack.c.l.b16 %v62
    %v108 = vunpack.c.l.b16 %v63
    %v109 = vunpack.c.l.b16 %v64
    %v110 = vunpack.c.l.b16 %v65
    %v111 = vunpack.c.l.b16 %v66
    %v112 = vpack.c.b16 %v97, %v96
    %v113 = vpack.c.b16 %v99, %v98
    %v114 = vpack.c.b16 %v101, %v100
    %v115 = vpack.c.b16 %v103, %v102
    %v116 = vpack.c.b16 %v105, %v104
    %v117 = vpack.c.b16 %v107, %v106
    %v118 = vpack.c.b16 %v109, %v108
    %v119 = vpack.c.b16 %v111, %v110
    %128 = vmatprep.subr.bf16.mxu0 0
    %129 = vmatpush1.bf16.msra.mxu0 %v112
    %130 = vmatprep.subr.bf16.mxu0 0
    %131 = vmatpush1.bf16.msra.mxu0 %v113
    %132 = vmatprep.subr.bf16.mxu0 0
    %133 = vmatpush1.bf16.msra.mxu0 %v114
    %134 = vmatprep.subr.bf16.mxu0 0
    %135 = vmatpush1.bf16.msra.mxu0 %v115
    %136 = vmatprep.subr.bf16.mxu0 0
    %137 = vmatpush1.bf16.msra.mxu0 %v116
    %138 = vmatprep.subr.bf16.mxu0 0
    %139 = vmatpush1.bf16.msra.mxu0 %v117
    %140 = vmatprep.subr.bf16.mxu0 0
    %141 = vmatpush1.bf16.msra.mxu0 %v118
    %142 = vmatprep.subr.bf16.mxu0 0
    %143 = vmatpush1.bf16.msra.mxu0 %v119
    %144 = vmatprep.subr.bf16.mxu0 0
    %145 = vmatpush1.bf16.msra.mxu0 0
    %146 = vmatprep.subr.bf16.mxu0 0
    %147 = vmatpush1.bf16.msra.mxu0 0
    %148 = vmatprep.subr.bf16.mxu0 0
    %149 = vmatpush1.bf16.msra.mxu0 0
    %150 = vmatprep.subr.bf16.mxu0 0
    %151 = vmatpush1.bf16.msra.mxu0 0
    %152 = vmatprep.subr.bf16.mxu0 0
    %153 = vmatpush1.bf16.msra.mxu0 0
    %154 = vmatprep.subr.bf16.mxu0 0
    %155 = vmatpush1.bf16.msra.mxu0 0
    %156 = vmatprep.subr.bf16.mxu0 0
    %157 = vmatpush1.bf16.msra.mxu0 0
    %158 = vmatprep.subr.bf16.mxu0 0
    %159 = vmatpush1.bf16.msra.mxu0 0
    %160 = vmatprep.mubr.bf16.mxu0 0
    %161 = vmatmul.mubr.bf16.gmra.mrb[0].mxu0 %v78
    %v162 = vpop.f32.mrb[0].mxu0
    %v163 = vadd.f32 %v72, %v162
    %v164 = vpop.f32.mrb[0].mxu0
    %v165 = vpop.f32.mrb[0].mxu0
    %v166 = vadd.f32 %v72, %v165
    %v167 = vpop.f32.mrb[0].mxu0
    %168 = vdwg.mxu0
    %v169 = vmax.f32 %v163, 0.0
    %v170 = vmax.f32 %v166, 0.0
    %v171 = vpack.c.bf16 %v170, %v169
    %v172 = vld [vmem:[#allocation4] sm:$0xf]
    %v173 = vld [vmem:[#allocation4 + $0x4] sm:$0xf]
    %v174 = vld [vmem:[#allocation4 + $0x8] sm:$0xf]
    %v175 = vld [vmem:[#allocation4 + $0xc] sm:$0xf]
    %v176 = vld [vmem:[#allocation4 + $0x10] sm:$0xf]
    %v177 = vld [vmem:[#allocation4 + $0x14] sm:$0xf]
    %v178 = vld [vmem:[#allocation4 + $0x18] sm:$0xf]
    %v179 = vld [vmem:[#allocation4 + $0x1c] sm:$0xf]
    %v180 = vld [vmem:[#allocation4 + $0x20] sm:$0xf]
    %v181 = vld [vmem:[#allocation4 + $0x24] sm:$0xf]
    %v182 = vld [vmem:[#allocation4 + $0x28] sm:$0xf]
    %v183 = vld [vmem:[#allocation4 + $0x2c] sm:$0xf]
    %v184 = vld [vmem:[#allocation4 + $0x30] sm:$0xf]
    %v185 = vld [vmem:[#allocation4 + $0x34] sm:$0xf]
    %v186 = vld [vmem:[#allocation4 + $0x38] sm:$0xf]
    %v187 = vld [vmem:[#allocation4 + $0x3c] sm:$0xf]
    %v188 = vld [vmem:[%s4] sm:$0x1]
    %v190 = vlaneseq
    %v191 = vshrl.u32 %v190, 7
    %v192 = vsub.s32 0, %v191
    %v193 = vrot.slane %v188, %v192
    %v211 = vunpack.c.l.b16 %v172
    %v212 = vunpack.c.l.b16 %v173
    %v213 = vunpack.c.l.b16 %v174
    %v214 = vunpack.c.l.b16 %v175
    %v215 = vunpack.c.l.b16 %v176
    %v216 = vunpack.c.l.b16 %v177
    %v217 = vunpack.c.l.b16 %v178
    %v218 = vunpack.c.l.b16 %v179
    %v219 = vunpack.c.l.b16 %v180
    %v220 = vunpack.c.l.b16 %v181
    %v221 = vunpack.c.l.b16 %v182
    %v222 = vunpack.c.l.b16 %v183
    %v223 = vunpack.c.l.b16 %v184
    %v224 = vunpack.c.l.b16 %v185
    %v225 = vunpack.c.l.b16 %v186
    %v226 = vunpack.c.l.b16 %v187
    %v227 = vpack.c.b16 %v212, %v211
    %v228 = vpack.c.b16 %v214, %v213
    %v229 = vpack.c.b16 %v216, %v215
    %v230 = vpack.c.b16 %v218, %v217
    %v231 = vpack.c.b16 %v220, %v219
    %v232 = vpack.c.b16 %v222, %v221
    %v233 = vpack.c.b16 %v224, %v223
    %v234 = vpack.c.b16 %v226, %v225
    %243 = vmatprep.subr.bf16.mxu0 0
    %244 = vmatpush1.bf16.msra.mxu0 %v227
    %245 = vmatprep.subr.bf16.mxu0 0
    %246 = vmatpush1.bf16.msra.mxu0 %v228
    %247 = vmatprep.subr.bf16.mxu0 0
    %248 = vmatpush1.bf16.msra.mxu0 %v229
    %249 = vmatprep.subr.bf16.mxu0 0
    %250 = vmatpush1.bf16.msra.mxu0 %v230
    %251 = vmatprep.subr.bf16.mxu0 0
    %252 = vmatpush1.bf16.msra.mxu0 %v231
    %253 = vmatprep.subr.bf16.mxu0 0
    %254 = vmatpush1.bf16.msra.mxu0 %v232
    %255 = vmatprep.subr.bf16.mxu0 0
    %256 = vmatpush1.bf16.msra.mxu0 %v233
    %257 = vmatprep.subr.bf16.mxu0 0
    %258 = vmatpush1.bf16.msra.mxu0 %v234
    %259 = vmatprep.subr.bf16.mxu0 0
    %260 = vmatpush1.bf16.msra.mxu0 0
    %261 = vmatprep.subr.bf16.mxu0 0
    %262 = vmatpush1.bf16.msra.mxu0 0
    %263 = vmatprep.subr.bf16.mxu0 0
    %264 = vmatpush1.bf16.msra.mxu0 0
    %265 = vmatprep.subr.bf16.mxu0 0
    %266 = vmatpush1.bf16.msra.mxu0 0
    %267 = vmatprep.subr.bf16.mxu0 0
    %268 = vmatpush1.bf16.msra.mxu0 0
    %269 = vmatprep.subr.bf16.mxu0 0
    %270 = vmatpush1.bf16.msra.mxu0 0
    %271 = vmatprep.subr.bf16.mxu0 0
    %272 = vmatpush1.bf16.msra.mxu0 0
    %273 = vmatprep.subr.bf16.mxu0 0
    %274 = vmatpush1.bf16.msra.mxu0 0
    %275 = vmatprep.mubr.bf16.mxu0 0
    %276 = vmatmul.mubr.bf16.gmra.mrb[0].mxu0 %v171
    %v277 = vpop.f32.mrb[0].mxu0
    %v278 = vadd.f32 %v193, %v277
    %v279 = vpop.f32.mrb[0].mxu0
    %v280 = vpop.f32.mrb[0].mxu0
    %v281 = vadd.f32 %v193, %v280
    %v282 = vpop.f32.mrb[0].mxu0
    %283 = vdwg.mxu0
    %284 = vst [vmem:[%s5] sm:$0xff] %v278
    %285 = vst [vmem:[%s5 + $0x8] sm:$0xff] %v281
    // Predicated region
    $region30: #{classifier_forward.1} parent=1 // pred_check
      _
    $region31: #{classifier_forward.1} parent=1 // pred_check_branch
      %287 = sbr.rel (0) target = $region33
    $region32: #{classifier_forward.1} parent=1 // pred_region
      _
    $region33: #{classifier_forward.1} parent=1 // pred_fallthru
      _
    // Predicated region
    $region34: #{classifier_forward.1} parent=1 // pred_check
      _
    $region35: #{classifier_forward.1} parent=1 // pred_check_branch
      %289 = sbr.rel (0) target = $region37
    $region36: #{classifier_forward.1} parent=1 // pred_region
      _
    $region37: #{classifier_forward.1} parent=1 // pred_fallthru
      _
    %290 = vsyncpa [#allocation3], 1
    %291 = vsyncpa [#allocation5], 1

</llo_original>
